<compile_context>
chip_gen: v5e
topology: v5e:2x2
jax: 0.10.0
libtpu: 0.0.40
codegen_flags: <defaults>
</compile_context>

<pallas_src>
import functools

import jax
import jax.numpy as jnp
from jax.experimental import pallas as pl
from jax.experimental.pallas import tpu as pltpu


def _round_up(n, m):
    return ((n + m - 1) // m) * m


def _mlp_kernel(x_ref, c_ref, w1a_ref, w1b_ref, b1_ref, w2_ref, b2_ref,
                w3_ref, b3_ref, o_ref):
    # One row-tile of tokens; weights/biases are VMEM-resident full blocks.
    cdt = w1a_ref.dtype                                     # compute dtype (bf16)

    xb = x_ref[...].astype(cdt)                              # (TILE_M, input_dim)
    cb = c_ref[...].astype(cdt)                              # (TILE_M, cond_dim)

    # fc1 + relu: split concat matmul into two dots accumulating in f32.
    h1 = (jnp.dot(xb, w1a_ref[...], preferred_element_type=jnp.float32)
          + jnp.dot(cb, w1b_ref[...], preferred_element_type=jnp.float32)
          + b1_ref[...])
    h1 = jnp.maximum(h1, 0.0).astype(cdt)                    # (TILE_M, Hp)

    # fc2 + relu
    h2 = jnp.dot(h1, w2_ref[...], preferred_element_type=jnp.float32) + b2_ref[...]
    h2 = jnp.maximum(h2, 0.0).astype(cdt)                    # (TILE_M, Hp)

    # fc3 (no activation) -> true-width output (masked store, few HBM bytes)
    out = jnp.dot(h2, w3_ref[...], preferred_element_type=jnp.float32) + b3_ref[...]
    o_ref[...] = out.astype(o_ref.dtype)                     # (TILE_M, input_dim)


def prepare_params(params, input_dim, condition_dim, compute_dtype=jnp.bfloat16):
    """One-time weight prep: transpose (out,in)->(in,out), split w1 into the x /
    condition halves, cast to the compute dtype (bf16 for the MXU), and zero-pad
    the hidden dim to a multiple of 128 lanes.  Biases stay f32 (added after the
    f32 accumulation).  Call once at init, NOT per forward."""
    hidden = params["w1"].shape[0]
    hp = _round_up(hidden, 128)

    w1a = params["w1"][:, :input_dim].T.astype(compute_dtype)      # (in,  hidden)
    w1b = params["w1"][:, input_dim:].T.astype(compute_dtype)      # (cond,hidden)
    w2t = params["w2"].T.astype(compute_dtype)                      # (hidden, hidden)
    w3t = params["w3"].T.astype(compute_dtype)                      # (hidden, in)

    w1a_p = jnp.zeros((input_dim, hp), compute_dtype).at[:, :hidden].set(w1a)
    w1b_p = jnp.zeros((condition_dim, hp), compute_dtype).at[:, :hidden].set(w1b)
    b1_p = jnp.zeros((1, hp), jnp.float32).at[0, :hidden].set(
        params["b1"].astype(jnp.float32))
    w2_p = jnp.zeros((hp, hp), compute_dtype).at[:hidden, :hidden].set(w2t)
    b2_p = jnp.zeros((1, hp), jnp.float32).at[0, :hidden].set(
        params["b2"].astype(jnp.float32))
    w3_p = jnp.zeros((hp, input_dim), compute_dtype).at[:hidden, :].set(w3t)
    b3_p = params["b3"].astype(jnp.float32).reshape(1, input_dim)

    return {"w1a": w1a_p, "w1b": w1b_p, "b1": b1_p,
            "w2": w2_p, "b2": b2_p, "w3": w3_p, "b3": b3_p}


@functools.partial(jax.jit, static_argnames=("tile_m_max",))
def diffusion_model_forward(x, condition, prep, tile_m_max=1024):
    """x: (B, S, input_dim), condition: (B, S, condition_dim) -> (B, S, input_dim)."""
    B, S, input_dim = x.shape
    condition_dim = condition.shape[2]
    k1 = input_dim + condition_dim
    hp = prep["w2"].shape[0]
    M = B * S

    # ---- row-tile / grid selection ------------------------------------------
    tile_m_max = max(8, _round_up(tile_m_max, 8))
    # At least min(4, cdiv(M,8)) tiles so both v7x TensorCores get row tiles;
    # padding per tile is bounded to < 8 rows.
    num_tiles = max(pl.cdiv(M, tile_m_max), min(4, pl.cdiv(M, 8)))
    tile_m = _round_up(pl.cdiv(M, num_tiles), 8)
    num_tiles = pl.cdiv(M, tile_m)
    m_pad = num_tiles * tile_m

    x2 = x.reshape(M, input_dim)
    c2 = condition.reshape(M, condition_dim)
    if m_pad != M:
        x2 = jnp.pad(x2, ((0, m_pad - M), (0, 0)))
        c2 = jnp.pad(c2, ((0, m_pad - M), (0, 0)))

    # ---- VMEM budget / cost estimate ----------------------------------------
    wsz = prep["w2"].dtype.itemsize
    weight_bytes = (k1 * hp + hp * hp + hp * input_dim) * wsz + (2 * hp + input_dim) * 4
    act_bytes = 2 * tile_m * k1 * x.dtype.itemsize          # double-buffered input tiles
    out_bytes = 2 * tile_m * input_dim * 4                   # double-buffered output tile
    tmp_bytes = 4 * tile_m * hp * 4                          # h1/h2 f32 + bf16 copies (rough)
    needed = weight_bytes + act_bytes + out_bytes + tmp_bytes
    vmem_limit = int(min(max(2 * needed, 16 * 2**20), 100 * 2**20))

    flops = 2 * m_pad * (k1 * hp + hp * hp + hp * input_dim)
    bytes_accessed = (m_pad * k1 * x.dtype.itemsize
                      + m_pad * input_dim * 4
                      + weight_bytes)

    grid = (num_tiles,)
    resident = dict(pipeline_mode=pl.Buffered(1))            # constant index_map -> 1 buffer

    out_padded = pl.pallas_call(
        _mlp_kernel,
        out_shape=jax.ShapeDtypeStruct((m_pad, input_dim), x.dtype),
        grid=grid,
        in_specs=[
            pl.BlockSpec((tile_m, input_dim), lambda i: (i, 0)),        # x row tile
            pl.BlockSpec((tile_m, condition_dim), lambda i: (i, 0)),    # cond row tile
            pl.BlockSpec((input_dim, hp), lambda i: (0, 0), **resident),      # w1a
            pl.BlockSpec((condition_dim, hp), lambda i: (0, 0), **resident),  # w1b
            pl.BlockSpec((1, hp), lambda i: (0, 0), **resident),              # b1
            pl.BlockSpec((hp, hp), lambda i: (0, 0), **resident),             # w2
            pl.BlockSpec((1, hp), lambda i: (0, 0), **resident),              # b2
            pl.BlockSpec((hp, input_dim), lambda i: (0, 0), **resident),      # w3
            pl.BlockSpec((1, input_dim), lambda i: (0, 0), **resident),       # b3
        ],
        out_specs=pl.BlockSpec((tile_m, input_dim), lambda i: (i, 0)),
        compiler_params=pltpu.CompilerParams(
            dimension_semantics=("parallel",),
            vmem_limit_bytes=vmem_limit),
        cost_estimate=pl.CostEstimate(
            flops=flops, transcendentals=0, bytes_accessed=bytes_accessed),
    )(x2, c2, prep["w1a"], prep["w1b"], prep["b1"],
      prep["w2"], prep["b2"], prep["w3"], prep["b3"])

    out = out_padded[:M] if m_pad != M else out_padded
    return out.reshape(B, S, input_dim)


def init_params(key, input_dim, condition_dim, hidden_dim):
    ks = jax.random.split(key, 6)

    def unif(k, shape, fan_in):
        bound = 1.0 / jnp.sqrt(fan_in)
        return jax.random.uniform(k, shape, jnp.float32, -bound, bound)

    return {
        "w1": unif(ks[0], (hidden_dim, input_dim + condition_dim), input_dim + condition_dim),
        "b1": unif(ks[1], (hidden_dim,), input_dim + condition_dim),
        "w2": unif(ks[2], (hidden_dim, hidden_dim), hidden_dim),
        "b2": unif(ks[3], (hidden_dim,), hidden_dim),
        "w3": unif(ks[4], (input_dim, hidden_dim), hidden_dim),
        "b3": unif(ks[5], (input_dim,), hidden_dim),
    }


def reference_forward(x, condition, params, compute_dtype=jnp.float32):
    """Pure-JAX reference.  With compute_dtype=bf16 it mirrors the kernel's
    numerics (bf16 operands, f32 accumulation, f32 bias adds) exactly."""
    input_dim = x.shape[-1]
    cdt = compute_dtype
    w1a = params["w1"][:, :input_dim].T.astype(cdt)
    w1b = params["w1"][:, input_dim:].T.astype(cdt)
    h1 = (jnp.dot(x.astype(cdt), w1a, preferred_element_type=jnp.float32)
          + jnp.dot(condition.astype(cdt), w1b, preferred_element_type=jnp.float32)
          + params["b1"].astype(jnp.float32))
    h1 = jnp.maximum(h1, 0.0).astype(cdt)
    h2 = (jnp.dot(h1, params["w2"].T.astype(cdt), preferred_element_type=jnp.float32)
          + params["b2"].astype(jnp.float32))
    h2 = jnp.maximum(h2, 0.0).astype(cdt)
    out = (jnp.dot(h2, params["w3"].T.astype(cdt), preferred_element_type=jnp.float32)
           + params["b3"].astype(jnp.float32))
    return out


if __name__ == "__main__":
    key = jax.random.PRNGKey(0)
    k_x, k_c, k_p = jax.random.split(key, 3)

    B, S = 2, 8
    input_dim, condition_dim, hidden_dim = 16, 16, 32

    x = jax.random.normal(k_x, (B, S, input_dim), jnp.float32)
    condition = jax.random.normal(k_c, (B, S, condition_dim), jnp.float32)
    params = init_params(k_p, input_dim, condition_dim, hidden_dim)

    # Weight prep (split + transpose + bf16 cast + lane padding) done once.
    prep = prepare_params(params, input_dim, condition_dim)
    prep = jax.tree_util.tree_map(jax.block_until_ready, prep)

    out = diffusion_model_forward(x, condition, prep)
    out = jax.block_until_ready(out)

    ref_bf16 = reference_forward(x, condition, params, compute_dtype=jnp.bfloat16)
    ref_f32 = reference_forward(x, condition, params, compute_dtype=jnp.float32)

    assert out.shape == (B, S, input_dim)
    # Tight check against the bf16-matched reference; loose sanity vs pure f32.
    assert jnp.allclose(out, ref_bf16, atol=2e-3, rtol=2e-3)
    assert jnp.allclose(out, ref_f32, atol=1e-1, rtol=1e-1)

    print("KERNEL_OK")
</pallas_src>

<mosaic_0001>
module attributes {stable_mosaic.version = 11 : i64} {
  func.func @_mlp_kernel(%arg0: i32, %arg1: memref<8x16xf32, #tpu.memory_space<vmem>>, %arg2: memref<8x16xf32, #tpu.memory_space<vmem>>, %arg3: memref<16x128xbf16, #tpu.memory_space<vmem>>, %arg4: memref<16x128xbf16, #tpu.memory_space<vmem>>, %arg5: memref<1x128xf32, #tpu.memory_space<vmem>>, %arg6: memref<128x128xbf16, #tpu.memory_space<vmem>>, %arg7: memref<1x128xf32, #tpu.memory_space<vmem>>, %arg8: memref<128x16xbf16, #tpu.memory_space<vmem>>, %arg9: memref<1x16xf32, #tpu.memory_space<vmem>>, %arg10: memref<8x16xf32, #tpu.memory_space<vmem>>) attributes {dimension_semantics = [#tpu.dimension_semantics<parallel>], iteration_bounds = array<i64: 2>, scalar_prefetch = 0 : i64, scratch_operands = 0 : i64, tpu.core_type = #tpu.core_type<tc>, window_params = [{transform_indices = @transform_0, window_bounds = array<i64: 8, 16>}, {transform_indices = @transform_1, window_bounds = array<i64: 8, 16>}, {pipeline_mode = #tpu.pipeline_mode<synchronous>, transform_indices = @transform_2, window_bounds = array<i64: 16, 128>}, {pipeline_mode = #tpu.pipeline_mode<synchronous>, transform_indices = @transform_3, window_bounds = array<i64: 16, 128>}, {pipeline_mode = #tpu.pipeline_mode<synchronous>, transform_indices = @transform_4, window_bounds = array<i64: 1, 128>}, {pipeline_mode = #tpu.pipeline_mode<synchronous>, transform_indices = @transform_5, window_bounds = array<i64: 128, 128>}, {pipeline_mode = #tpu.pipeline_mode<synchronous>, transform_indices = @transform_6, window_bounds = array<i64: 1, 128>}, {pipeline_mode = #tpu.pipeline_mode<synchronous>, transform_indices = @transform_7, window_bounds = array<i64: 128, 16>}, {pipeline_mode = #tpu.pipeline_mode<synchronous>, transform_indices = @transform_8, window_bounds = array<i64: 1, 16>}, {transform_indices = @transform_9, window_bounds = array<i64: 8, 16>}]} {
    %c0 = arith.constant 0 : index
    %c0_0 = arith.constant 0 : index
    %0 = vector.load %arg1[%c0, %c0_0] : memref<8x16xf32, #tpu.memory_space<vmem>>, vector<8x16xf32>
    %1 = arith.truncf %0 : vector<8x16xf32> to vector<8x16xbf16>
    %c0_1 = arith.constant 0 : index
    %c0_2 = arith.constant 0 : index
    %2 = vector.load %arg2[%c0_1, %c0_2] : memref<8x16xf32, #tpu.memory_space<vmem>>, vector<8x16xf32>
    %3 = arith.truncf %2 : vector<8x16xf32> to vector<8x16xbf16>
    %c0_3 = arith.constant 0 : index
    %c0_4 = arith.constant 0 : index
    %4 = vector.load %arg3[%c0_3, %c0_4] : memref<16x128xbf16, #tpu.memory_space<vmem>>, vector<16x128xbf16>
    %cst = arith.constant dense<0.000000e+00> : vector<8x128xf32>
    %5 = tpu.matmul %1, %4, %cst {dimension_numbers = #tpu.dot_dimension_numbers<[1], [0], [0], [1], [0, 0, 1, 1], [], []>} : vector<8x16xbf16>, vector<16x128xbf16>, vector<8x128xf32> -> vector<8x128xf32>
    %c0_5 = arith.constant 0 : index
    %c0_6 = arith.constant 0 : index
    %6 = vector.load %arg4[%c0_5, %c0_6] : memref<16x128xbf16, #tpu.memory_space<vmem>>, vector<16x128xbf16>
    %cst_7 = arith.constant dense<0.000000e+00> : vector<8x128xf32>
    %7 = tpu.matmul %3, %6, %cst_7 {dimension_numbers = #tpu.dot_dimension_numbers<[1], [0], [0], [1], [0, 0, 1, 1], [], []>} : vector<8x16xbf16>, vector<16x128xbf16>, vector<8x128xf32> -> vector<8x128xf32>
    %8 = arith.addf %5, %7 : vector<8x128xf32>
    %c0_8 = arith.constant 0 : index
    %c0_9 = arith.constant 0 : index
    %9 = vector.load %arg5[%c0_8, %c0_9] : memref<1x128xf32, #tpu.memory_space<vmem>>, vector<1x128xf32>
    %10 = vector.broadcast %9 : vector<1x128xf32> to vector<8x128xf32>
    %11 = arith.addf %8, %10 : vector<8x128xf32>
    %cst_10 = arith.constant 0.000000e+00 : f32
    %12 = vector.broadcast %cst_10 : f32 to vector<8x128xf32>
    %13 = arith.maximumf %11, %12 : vector<8x128xf32>
    %14 = arith.truncf %13 : vector<8x128xf32> to vector<8x128xbf16>
    %c0_11 = arith.constant 0 : index
    %c0_12 = arith.constant 0 : index
    %15 = vector.load %arg6[%c0_11, %c0_12] : memref<128x128xbf16, #tpu.memory_space<vmem>>, vector<128x128xbf16>
    %cst_13 = arith.constant dense<0.000000e+00> : vector<8x128xf32>
    %16 = tpu.matmul %14, %15, %cst_13 {dimension_numbers = #tpu.dot_dimension_numbers<[1], [0], [0], [1], [0, 0, 1, 1], [], []>} : vector<8x128xbf16>, vector<128x128xbf16>, vector<8x128xf32> -> vector<8x128xf32>
    %c0_14 = arith.constant 0 : index
    %c0_15 = arith.constant 0 : index
    %17 = vector.load %arg7[%c0_14, %c0_15] : memref<1x128xf32, #tpu.memory_space<vmem>>, vector<1x128xf32>
    %18 = vector.broadcast %17 : vector<1x128xf32> to vector<8x128xf32>
    %19 = arith.addf %16, %18 : vector<8x128xf32>
    %cst_16 = arith.constant 0.000000e+00 : f32
    %20 = vector.broadcast %cst_16 : f32 to vector<8x128xf32>
    %21 = arith.maximumf %19, %20 : vector<8x128xf32>
    %22 = arith.truncf %21 : vector<8x128xf32> to vector<8x128xbf16>
    %c0_17 = arith.constant 0 : index
    %c0_18 = arith.constant 0 : index
    %23 = vector.load %arg8[%c0_17, %c0_18] : memref<128x16xbf16, #tpu.memory_space<vmem>>, vector<128x16xbf16>
    %cst_19 = arith.constant dense<0.000000e+00> : vector<8x16xf32>
    %24 = tpu.matmul %22, %23, %cst_19 {dimension_numbers = #tpu.dot_dimension_numbers<[1], [0], [0], [1], [0, 0, 1, 1], [], []>} : vector<8x128xbf16>, vector<128x16xbf16>, vector<8x16xf32> -> vector<8x16xf32>
    %c0_20 = arith.constant 0 : index
    %c0_21 = arith.constant 0 : index
    %25 = vector.load %arg9[%c0_20, %c0_21] : memref<1x16xf32, #tpu.memory_space<vmem>>, vector<1x16xf32>
    %26 = vector.broadcast %25 : vector<1x16xf32> to vector<8x16xf32>
    %27 = arith.addf %24, %26 : vector<8x16xf32>
    %c0_22 = arith.constant 0 : index
    %c0_23 = arith.constant 0 : index
    %28 = vector.load %arg10[%c0_22, %c0_23] : memref<8x16xf32, #tpu.memory_space<vmem>>, vector<8x16xf32>
    tpu.vector_store %arg10[%c0_22, %c0_23], %27 {strides = array<i32>} : memref<8x16xf32, #tpu.memory_space<vmem>>, vector<8x16xf32>,
    return
  }
  func.func @transform_0(%arg0: i32) -> (i32, i32) {
    %c0_i32 = arith.constant 0 : i32
    %c0_i32_0 = arith.constant 0 : i32
    return %arg0, %c0_i32 : i32, i32
  }
  func.func @transform_1(%arg0: i32) -> (i32, i32) {
    %c0_i32 = arith.constant 0 : i32
    %c0_i32_0 = arith.constant 0 : i32
    return %arg0, %c0_i32 : i32, i32
  }
  func.func @transform_2(%arg0: i32) -> (i32, i32) {
    %c0_i32 = arith.constant 0 : i32
    %c0_i32_0 = arith.constant 0 : i32
    %c0_i32_1 = arith.constant 0 : i32
    return %c0_i32, %c0_i32_0 : i32, i32
  }
  func.func @transform_3(%arg0: i32) -> (i32, i32) {
    %c0_i32 = arith.constant 0 : i32
    %c0_i32_0 = arith.constant 0 : i32
    %c0_i32_1 = arith.constant 0 : i32
    return %c0_i32, %c0_i32_0 : i32, i32
  }
  func.func @transform_4(%arg0: i32) -> (i32, i32) {
    %c0_i32 = arith.constant 0 : i32
    %c0_i32_0 = arith.constant 0 : i32
    %c0_i32_1 = arith.constant 0 : i32
    return %c0_i32, %c0_i32_0 : i32, i32
  }
  func.func @transform_5(%arg0: i32) -> (i32, i32) {
    %c0_i32 = arith.constant 0 : i32
    %c0_i32_0 = arith.constant 0 : i32
    %c0_i32_1 = arith.constant 0 : i32
    return %c0_i32, %c0_i32_0 : i32, i32
  }
  func.func @transform_6(%arg0: i32) -> (i32, i32) {
    %c0_i32 = arith.constant 0 : i32
    %c0_i32_0 = arith.constant 0 : i32
    %c0_i32_1 = arith.constant 0 : i32
    return %c0_i32, %c0_i32_0 : i32, i32
  }
  func.func @transform_7(%arg0: i32) -> (i32, i32) {
    %c0_i32 = arith.constant 0 : i32
    %c0_i32_0 = arith.constant 0 : i32
    %c0_i32_1 = arith.constant 0 : i32
    return %c0_i32, %c0_i32_0 : i32, i32
  }
  func.func @transform_8(%arg0: i32) -> (i32, i32) {
    %c0_i32 = arith.constant 0 : i32
    %c0_i32_0 = arith.constant 0 : i32
    %c0_i32_1 = arith.constant 0 : i32
    return %c0_i32, %c0_i32_0 : i32, i32
  }
  func.func @transform_9(%arg0: i32) -> (i32, i32) {
    %c0_i32 = arith.constant 0 : i32
    %c0_i32_0 = arith.constant 0 : i32
    return %arg0, %c0_i32 : i32, i32
  }
}

</mosaic_0001>

<llo_original>
// kernel: diffusion_model_forward.1
$region0: #{diffusion_model_forward.1}
  #allocation0 [shape = 'u32[]', space=smem, size = 0x4, offset = 0x4, fixed_abs, tag = 'smem constant byte address 0x4 - core index']
  #allocation1 [shape = 'u32[72,128]{1,0:T(1,128)}', space=vmem, size = 0x9000, scoped, tag = 'internal scratch']
  %s0 = inlined_call_operand.vmem [shape: f32[16,16], index: 0, kind: input, shape index: {}]
  %s1 = inlined_call_operand.hbm [shape: f32[16,16], index: 1, kind: input, shape index: {}]
  %s2 = inlined_call_operand.hbm [shape: bf16[16,128], index: 2, kind: input, shape index: {}]
  %s3 = inlined_call_operand.hbm [shape: bf16[16,128], index: 3, kind: input, shape index: {}]
  %s4 = inlined_call_operand.hbm [shape: f32[1,128], index: 4, kind: input, shape index: {}]
  %s5 = inlined_call_operand.vmem [shape: bf16[128,128], index: 5, kind: input, shape index: {}]
  %s6 = inlined_call_operand.hbm [shape: f32[1,128], index: 6, kind: input, shape index: {}]
  %s7 = inlined_call_operand.vmem [shape: bf16[128,16], index: 7, kind: input, shape index: {}]
  %s8 = inlined_call_operand.hbm [shape: f32[1,16], index: 8, kind: input, shape index: {}]
  %s9 = inlined_call_operand.hbm [shape: f32[16,16], index: 9, kind: output, shape index: {}]
  %s10 = sld [smem:[#allocation0]]
  $region93: #{diffusion_model_forward.1} parent=0
    _
  %s12 = ssub.s32 1, %s10
  %s13 = scalar_select 0, %s12, %s10
  $region1: #{diffusion_model_forward.1} parent=0
    #allocation2 [shape = 'u8[8192]{0}', space=vmem, size = 0x2000, scoped, tag = 'input window, operand 1']
    #allocation3 [shape = 's32[2]{0}', space=sflag, size = 0x8, scoped, tag = 'scoped memory for diffusion_model_forward.1']
    #allocation4 [shape = 's32[2]{0}', space=sflag, size = 0x8, scoped, tag = 'scoped memory for diffusion_model_forward.1']
    #allocation5 [shape = 'u8[4096]{0}', space=vmem, size = 0x1000, scoped, tag = 'input window, operand 2, single buffered']
    #allocation6 [shape = 's32[1]{0}', space=sflag, size = 0x4, scoped, tag = 'scoped memory for diffusion_model_forward.1']
    #allocation7 [shape = 'u8[4096]{0}', space=vmem, size = 0x1000, scoped, tag = 'input window, operand 3, single buffered']
    #allocation8 [shape = 'u8[512]{0}', space=vmem, size = 0x400, scoped, tag = 'input window, operand 4, single buffered']
    #allocation9 [shape = 's32[1]{0}', space=sflag, size = 0x4, scoped, tag = 'scoped memory for diffusion_model_forward.1']
    #allocation10 [shape = 'u8[512]{0}', space=vmem, size = 0x400, scoped, tag = 'input window, operand 6, single buffered']
    #allocation11 [shape = 'u8[512]{0}', space=vmem, size = 0x400, scoped, tag = 'input window, operand 8, single buffered']
    #allocation12 [shape = 's32[1]{0}', space=sflag, size = 0x4, scoped, tag = 'scoped memory for diffusion_model_forward.1']
    #allocation13 [shape = 'u8[8192]{0}', space=vmem, size = 0x2000, scoped, tag = 'output window, operand 0']
    %14 = vsyncpa [#allocation3], 0
    %s15 = scalar_lea.sflag [#allocation3], 1
    %16 = vsyncpa %s15, 0
    %17 = vsyncpa [#allocation6], 0
    %18 = vsyncpa [#allocation9], 0
    %19 = vsyncpa [#allocation12], 0
    %20 = vsyncpa [#allocation4], 0
    %s21 = scalar_lea.sflag [#allocation4], 1
    %22 = vsyncpa %s21, 0
    loop: start=0, step=1, limit=4
    $region2: #{diffusion_model_forward.1} parent=1 // loop_pre_header
      _
    $region3: #{diffusion_model_forward.1} parent=1 // loop_header
      %s24 = sphi 0, %s28
      %p25 = scmp.ge.s32.totalorder %s24, 4
      %s34 = sphi 0, %s36
      %s37 = sphi 0, %s34
      %s38 = sphi 0, %s37
      %s54 = sphi 0, %s38
      %s60 = sphi 0, %s62
      %s63 = sphi 0, %s60
      %s64 = sphi 0, %s63
      %s80 = sphi 0, %s64
      %s84 = sphi 0, %s84
      %s86 = sphi 0, %s84
      %s87 = sphi 0, %s86
      %s101 = sphi 0, %s87
      %s105 = sphi 0, %s105
      %s107 = sphi 0, %s105
      %s108 = sphi 0, %s107
      %s122 = sphi 0, %s108
      %s126 = sphi 0, %s126
      %s128 = sphi 0, %s126
      %s129 = sphi 0, %s128
      %s143 = sphi 0, %s129
      %s147 = sphi 0, %s147
      %s149 = sphi 0, %s147
      %s150 = sphi 0, %s149
      %s164 = sphi 0, %s150
      %s168 = sphi 0, %s168
      %s170 = sphi 0, %s168
      %s171 = sphi 0, %s170
      %s185 = sphi 0, %s171
      %s189 = sphi 0, %s189
      %s191 = sphi 0, %s189
      %s192 = sphi 0, %s191
      %s206 = sphi 0, %s192
      %s210 = sphi 0, %s210
      %s212 = sphi 0, %s210
      %s213 = sphi 0, %s212
      %s227 = sphi 0, %s213
      %s233 = sphi 0, %s235
      %s236 = sphi 0, %s233
      %s237 = sphi 0, %s236
      %s253 = sphi 0, %s237
    $region4: #{diffusion_model_forward.1} parent=1 // loop_header_branch
      %27 = sbr.rel (%p25) target = $region8
    $region5: #{diffusion_model_forward.1} parent=1 // loop_body
      %s29 = ssub.s32 %s24, 1
      %s30 = ssub.s32 %s24, 2
      %s31 = sadd.s32 %s24, 1
      %s32 = ssub.s32 %s24, %s31
      %p33 = scmp.eq.s32.totalorder %s32, 0
      %s35 = sadd.s32 %s34, 1
      %s36 = scalar_select %p33, %s34, %s35
      %p39 = pneg %p33
      %p40 = scmp.eq.s32.totalorder %s24, 1
      %p41 = por %p39, %p40
      %p42 = scmp.ne.s32.totalorder %s34, %s37
      %p43 = scmp.eq.s32.totalorder %s24, 0
      %p44 = por %p42, %p43
      %p45 = scmp.ne.s32.totalorder %s34, %s37
      %p46 = scmp.eq.s32.totalorder %s29, 1
      %p47 = por %p45, %p46
      %p48 = scmp.ne.s32.totalorder %s37, %s38
      %p49 = scmp.eq.s32.totalorder %s29, 0
      %p50 = por %p48, %p49
      %p51 = scmp.ne.s32.totalorder %s37, %s38
      %p52 = scmp.eq.s32.totalorder %s30, 1
      %p53 = por %p51, %p52
      %p55 = scmp.ne.s32.totalorder %s38, %s54
      %p56 = scmp.eq.s32.totalorder %s30, 0
      %p57 = por %p55, %p56
      %s58 = ssub.s32 %s24, %s31
      %p59 = scmp.eq.s32.totalorder %s58, 0
      %s61 = sadd.s32 %s60, 1
      %s62 = scalar_select %p59, %s60, %s61
      %p65 = pneg %p59
      %p66 = scmp.eq.s32.totalorder %s24, 1
      %p67 = por %p65, %p66
      %p68 = scmp.ne.s32.totalorder %s60, %s63
      %p69 = scmp.eq.s32.totalorder %s24, 0
      %p70 = por %p68, %p69
      %p71 = scmp.ne.s32.totalorder %s60, %s63
      %p72 = scmp.eq.s32.totalorder %s29, 1
      %p73 = por %p71, %p72
      %p74 = scmp.ne.s32.totalorder %s63, %s64
      %p75 = scmp.eq.s32.totalorder %s29, 0
      %p76 = por %p74, %p75
      %p77 = scmp.ne.s32.totalorder %s63, %s64
      %p78 = scmp.eq.s32.totalorder %s30, 1
      %p79 = por %p77, %p78
      %p81 = scmp.ne.s32.totalorder %s64, %s80
      %p82 = scmp.eq.s32.totalorder %s30, 0
      %p83 = por %p81, %p82
      %s85 = sadd.s32 %s84, 1
      %p88 = scmp.eq.s32.totalorder %s24, 1
      %p89 = scmp.ne.s32.totalorder %s84, %s86
      %p90 = scmp.eq.s32.totalorder %s24, 0
      %p91 = por %p89, %p90
      %p92 = scmp.ne.s32.totalorder %s84, %s86
      %p93 = scmp.eq.s32.totalorder %s29, 1
      %p94 = por %p92, %p93
      %p95 = scmp.ne.s32.totalorder %s86, %s87
      %p96 = scmp.eq.s32.totalorder %s29, 0
      %p97 = por %p95, %p96
      %p98 = scmp.ne.s32.totalorder %s86, %s87
      %p99 = scmp.eq.s32.totalorder %s30, 1
      %p100 = por %p98, %p99
      %p102 = scmp.ne.s32.totalorder %s87, %s101
      %p103 = scmp.eq.s32.totalorder %s30, 0
      %p104 = por %p102, %p103
      %s106 = sadd.s32 %s105, 1
      %p109 = scmp.eq.s32.totalorder %s24, 1
      %p110 = scmp.ne.s32.totalorder %s105, %s107
      %p111 = scmp.eq.s32.totalorder %s24, 0
      %p112 = por %p110, %p111
      %p113 = scmp.ne.s32.totalorder %s105, %s107
      %p114 = scmp.eq.s32.totalorder %s29, 1
      %p115 = por %p113, %p114
      %p116 = scmp.ne.s32.totalorder %s107, %s108
      %p117 = scmp.eq.s32.totalorder %s29, 0
      %p118 = por %p116, %p117
      %p119 = scmp.ne.s32.totalorder %s107, %s108
      %p120 = scmp.eq.s32.totalorder %s30, 1
      %p121 = por %p119, %p120
      %p123 = scmp.ne.s32.totalorder %s108, %s122
      %p124 = scmp.eq.s32.totalorder %s30, 0
      %p125 = por %p123, %p124
      %s127 = sadd.s32 %s126, 1
      %p130 = scmp.eq.s32.totalorder %s24, 1
      %p131 = scmp.ne.s32.totalorder %s126, %s128
      %p132 = scmp.eq.s32.totalorder %s24, 0
      %p133 = por %p131, %p132
      %p134 = scmp.ne.s32.totalorder %s126, %s128
      %p135 = scmp.eq.s32.totalorder %s29, 1
      %p136 = por %p134, %p135
      %p137 = scmp.ne.s32.totalorder %s128, %s129
      %p138 = scmp.eq.s32.totalorder %s29, 0
      %p139 = por %p137, %p138
      %p140 = scmp.ne.s32.totalorder %s128, %s129
      %p141 = scmp.eq.s32.totalorder %s30, 1
      %p142 = por %p140, %p141
      %p144 = scmp.ne.s32.totalorder %s129, %s143
      %p145 = scmp.eq.s32.totalorder %s30, 0
      %p146 = por %p144, %p145
      %s148 = sadd.s32 %s147, 1
      %p151 = scmp.eq.s32.totalorder %s24, 1
      %p152 = scmp.ne.s32.totalorder %s147, %s149
      %p153 = scmp.eq.s32.totalorder %s24, 0
      %p154 = por %p152, %p153
      %p155 = scmp.ne.s32.totalorder %s147, %s149
      %p156 = scmp.eq.s32.totalorder %s29, 1
      %p157 = por %p155, %p156
      %p158 = scmp.ne.s32.totalorder %s149, %s150
      %p159 = scmp.eq.s32.totalorder %s29, 0
      %p160 = por %p158, %p159
      %p161 = scmp.ne.s32.totalorder %s149, %s150
      %p162 = scmp.eq.s32.totalorder %s30, 1
      %p163 = por %p161, %p162
      %p165 = scmp.ne.s32.totalorder %s150, %s164
      %p166 = scmp.eq.s32.totalorder %s30, 0
      %p167 = por %p165, %p166
      %s169 = sadd.s32 %s168, 1
      %p172 = scmp.eq.s32.totalorder %s24, 1
      %p173 = scmp.ne.s32.totalorder %s168, %s170
      %p174 = scmp.eq.s32.totalorder %s24, 0
      %p175 = por %p173, %p174
      %p176 = scmp.ne.s32.totalorder %s168, %s170
      %p177 = scmp.eq.s32.totalorder %s29, 1
      %p178 = por %p176, %p177
      %p179 = scmp.ne.s32.totalorder %s170, %s171
      %p180 = scmp.eq.s32.totalorder %s29, 0
      %p181 = por %p179, %p180
      %p182 = scmp.ne.s32.totalorder %s170, %s171
      %p183 = scmp.eq.s32.totalorder %s30, 1
      %p184 = por %p182, %p183
      %p186 = scmp.ne.s32.totalorder %s171, %s185
      %p187 = scmp.eq.s32.totalorder %s30, 0
      %p188 = por %p186, %p187
      %s190 = sadd.s32 %s189, 1
      %p193 = scmp.eq.s32.totalorder %s24, 1
      %p194 = scmp.ne.s32.totalorder %s189, %s191
      %p195 = scmp.eq.s32.totalorder %s24, 0
      %p196 = por %p194, %p195
      %p197 = scmp.ne.s32.totalorder %s189, %s191
      %p198 = scmp.eq.s32.totalorder %s29, 1
      %p199 = por %p197, %p198
      %p200 = scmp.ne.s32.totalorder %s191, %s192
      %p201 = scmp.eq.s32.totalorder %s29, 0
      %p202 = por %p200, %p201
      %p203 = scmp.ne.s32.totalorder %s191, %s192
      %p204 = scmp.eq.s32.totalorder %s30, 1
      %p205 = por %p203, %p204
      %p207 = scmp.ne.s32.totalorder %s192, %s206
      %p208 = scmp.eq.s32.totalorder %s30, 0
      %p209 = por %p207, %p208
      %s211 = sadd.s32 %s210, 1
      %p214 = scmp.eq.s32.totalorder %s24, 1
      %p215 = scmp.ne.s32.totalorder %s210, %s212
      %p216 = scmp.eq.s32.totalorder %s24, 0
      %p217 = por %p215, %p216
      %p218 = scmp.ne.s32.totalorder %s210, %s212
      %p219 = scmp.eq.s32.totalorder %s29, 1
      %p220 = por %p218, %p219
      %p221 = scmp.ne.s32.totalorder %s212, %s213
      %p222 = scmp.eq.s32.totalorder %s29, 0
      %p223 = por %p221, %p222
      %p224 = scmp.ne.s32.totalorder %s212, %s213
      %p225 = scmp.eq.s32.totalorder %s30, 1
      %p226 = por %p224, %p225
      %p228 = scmp.ne.s32.totalorder %s213, %s227
      %p229 = scmp.eq.s32.totalorder %s30, 0
      %p230 = por %p228, %p229
      %s231 = ssub.s32 %s24, %s31
      %p232 = scmp.eq.s32.totalorder %s231, 0
      %s234 = sadd.s32 %s233, 1
      %s235 = scalar_select %p232, %s233, %s234
      %p238 = pneg %p232
      %p239 = scmp.eq.s32.totalorder %s24, 1
      %p240 = por %p238, %p239
      %p241 = scmp.ne.s32.totalorder %s233, %s236
      %p242 = scmp.eq.s32.totalorder %s24, 0
      %p243 = por %p241, %p242
      %p244 = scmp.ne.s32.totalorder %s233, %s236
      %p245 = scmp.eq.s32.totalorder %s29, 1
      %p246 = por %p244, %p245
      %p247 = scmp.ne.s32.totalorder %s236, %s237
      %p248 = scmp.eq.s32.totalorder %s29, 0
      %p249 = por %p247, %p248
      %p250 = scmp.ne.s32.totalorder %s236, %s237
      %p251 = scmp.eq.s32.totalorder %s30, 1
      %p252 = por %p250, %p251
      %p254 = scmp.ne.s32.totalorder %s237, %s253
      %p255 = scmp.eq.s32.totalorder %s30, 0
      %p256 = por %p254, %p255
      %p257 = scmp.le.s32.totalorder 1, %s24
      %p258 = scmp.lt.s32.totalorder %s24, 3
      %p259 = pnand %p257, %p258
      %p260 = pneg %p259
      // Predicated region
      $region9: #{diffusion_model_forward.1} parent=5 // pred_check
        _
      $region10: #{diffusion_model_forward.1} parent=5 // pred_check_branch
        %262 = sbr.rel (%p259) target = $region12
      $region11: #{diffusion_model_forward.1} parent=5 // pred_region
        %s263 = ssub.s32 %s24, 1
        // Predicated region
        $region13: #{diffusion_model_forward.1} parent=11 // pred_check
          %p264 = pneg %p97
        $region14: #{diffusion_model_forward.1} parent=11 // pred_check_branch
          %266 = sbr.rel (%p264) target = $region16
        $region15: #{diffusion_model_forward.1} parent=11 // pred_region
          %268 = vsyncadd [#allocation6], 0
          %s269 = sshll.u32 %s2, 4
          %s270 = int_to_ptr.hbm [resolvable:$true] %s269
          %s271 = sshll.u32 [#allocation5], 4
          %s272 = int_to_ptr.vmem [resolvable:$true] %s271
          %277 = dma.hbm_to_vmem [thread:$0]  %s270, 128, %s272, [#allocation6], 64, 64, 4
        $region16: #{diffusion_model_forward.1} parent=11 // pred_fallthru
          _
        // Predicated region
        $region17: #{diffusion_model_forward.1} parent=11 // pred_check
          %p278 = pneg %p118
        $region18: #{diffusion_model_forward.1} parent=11 // pred_check_branch
          %280 = sbr.rel (%p278) target = $region20
        $region19: #{diffusion_model_forward.1} parent=11 // pred_region
          %282 = vsyncadd [#allocation6], 0
          %s283 = sshll.u32 %s3, 4
          %s284 = int_to_ptr.hbm [resolvable:$true] %s283
          %s285 = sshll.u32 [#allocation7], 4
          %s286 = int_to_ptr.vmem [resolvable:$true] %s285
          %291 = dma.hbm_to_vmem [thread:$0]  %s284, 128, %s286, [#allocation6], 64, 64, 4
        $region20: #{diffusion_model_forward.1} parent=11 // pred_fallthru
          _
        // Predicated region
        $region21: #{diffusion_model_forward.1} parent=11 // pred_check
          %p292 = pneg %p139
        $region22: #{diffusion_model_forward.1} parent=11 // pred_check_branch
          %294 = sbr.rel (%p292) target = $region24
        $region23: #{diffusion_model_forward.1} parent=11 // pred_region
          %296 = vsyncadd [#allocation9], 0
          %s298 = sshll.u32 %s4, 4
          %s299 = int_to_ptr.hbm [resolvable:$true] %s298
          %s300 = sshll.u32 [#allocation8], 4
          %s301 = int_to_ptr.vmem [resolvable:$true] %s300
          %303 = dma.hbm_to_vmem [thread:$0]  %s299, 16, %s301, [#allocation9]
        $region24: #{diffusion_model_forward.1} parent=11 // pred_fallthru
          _
        // Predicated region
        $region25: #{diffusion_model_forward.1} parent=11 // pred_check
          %p304 = pneg %p160
        $region26: #{diffusion_model_forward.1} parent=11 // pred_check_branch
          %306 = sbr.rel (%p304) target = $region28
        $region27: #{diffusion_model_forward.1} parent=11 // pred_region
          _
        $region28: #{diffusion_model_forward.1} parent=11 // pred_fallthru
          _
        // Predicated region
        $region29: #{diffusion_model_forward.1} parent=11 // pred_check
          %p307 = pneg %p181
        $region30: #{diffusion_model_forward.1} parent=11 // pred_check_branch
          %309 = sbr.rel (%p307) target = $region32
        $region31: #{diffusion_model_forward.1} parent=11 // pred_region
          %311 = vsyncadd [#allocation9], 0
          %s313 = sshll.u32 %s6, 4
          %s314 = int_to_ptr.hbm [resolvable:$true] %s313
          %s315 = sshll.u32 [#allocation10], 4
          %s316 = int_to_ptr.vmem [resolvable:$true] %s315
          %318 = dma.hbm_to_vmem [thread:$0]  %s314, 16, %s316, [#allocation9]
        $region32: #{diffusion_model_forward.1} parent=11 // pred_fallthru
          _
        // Predicated region
        $region33: #{diffusion_model_forward.1} parent=11 // pred_check
          %p319 = pneg %p202
        $region34: #{diffusion_model_forward.1} parent=11 // pred_check_branch
          %321 = sbr.rel (%p319) target = $region36
        $region35: #{diffusion_model_forward.1} parent=11 // pred_region
          _
        $region36: #{diffusion_model_forward.1} parent=11 // pred_fallthru
          _
        // Predicated region
        $region37: #{diffusion_model_forward.1} parent=11 // pred_check
          %p322 = pneg %p223
        $region38: #{diffusion_model_forward.1} parent=11 // pred_check_branch
          %324 = sbr.rel (%p322) target = $region40
        $region39: #{diffusion_model_forward.1} parent=11 // pred_region
          %326 = vsyncadd [#allocation12], 0
          %s328 = sshll.u32 %s8, 4
          %s329 = int_to_ptr.hbm [resolvable:$true] %s328
          %s330 = sshll.u32 [#allocation11], 4
          %s331 = int_to_ptr.vmem [resolvable:$true] %s330
          %333 = dma.hbm_to_vmem [thread:$0]  %s329, 16, %s331, [#allocation12]
        $region40: #{diffusion_model_forward.1} parent=11 // pred_fallthru
          _
      $region12: #{diffusion_model_forward.1} parent=5 // pred_fallthru
        _
      %p334 = scmp.lt.s32.totalorder %s24, 2
      // Predicated region
      $region41: #{diffusion_model_forward.1} parent=5 // pred_check
        %p335 = pneg %p334
      $region42: #{diffusion_model_forward.1} parent=5 // pred_check_branch
        %337 = sbr.rel (%p335) target = $region44
      $region43: #{diffusion_model_forward.1} parent=5 // pred_region
        // Predicated region
        $region45: #{diffusion_model_forward.1} parent=43 // pred_check
          %p338 = pneg %p44
        $region46: #{diffusion_model_forward.1} parent=43 // pred_check_branch
          %340 = sbr.rel (%p338) target = $region48
        $region47: #{diffusion_model_forward.1} parent=43 // pred_region
          %p341 = scmp.lt.s32.totalorder %s24, 1
          %s342 = scalar_select %p341, %s24, 1
          %s343 = smul.addr %s342, 8
          %s344 = scalar_lea.vmem %s0, %s343
        $region48: #{diffusion_model_forward.1} parent=43 // pred_fallthru
          _
        // Predicated region
        $region49: #{diffusion_model_forward.1} parent=43 // pred_check
          %p345 = pneg %p70
        $region50: #{diffusion_model_forward.1} parent=43 // pred_check_branch
          %347 = sbr.rel (%p345) target = $region52
        $region51: #{diffusion_model_forward.1} parent=43 // pred_region
          %s348 = sand.u32 %s60, 1
          %s349 = scalar_lea.sflag [#allocation3], %s348
          %s350 = sand.u32 %s60, 1
          %s351 = smul.addr %s350, 8
          %s352 = scalar_lea.vmem [#allocation2], %s351
          %354 = vsyncadd %s349, 0
          %s355 = smul.addr %s24, 8
          %s356 = scalar_lea.hbm %s1, %s355
          %s358 = sshll.u32 %s356, 4
          %s359 = int_to_ptr.hbm [resolvable:$true] %s358
          %s360 = sshll.u32 %s352, 4
          %s361 = int_to_ptr.vmem [resolvable:$true] %s360
          %363 = dma.hbm_to_vmem [thread:$0]  %s359, 128, %s361, %s349
        $region52: #{diffusion_model_forward.1} parent=43 // pred_fallthru
          _
      $region44: #{diffusion_model_forward.1} parent=5 // pred_fallthru
        _
      %p364 = scmp.le.s32.totalorder 1, %s24
      %p365 = scmp.lt.s32.totalorder %s24, 3
      %p366 = pnand %p364, %p365
      %p367 = pneg %p366
      // Predicated region
      $region53: #{diffusion_model_forward.1} parent=5 // pred_check
        _
      $region54: #{diffusion_model_forward.1} parent=5 // pred_check_branch
        %369 = sbr.rel (%p366) target = $region56
      $region55: #{diffusion_model_forward.1} parent=5 // pred_region
        %s370 = ssub.s32 %s24, 1
        %s371 = sand.u32 %s63, 1
        %s372 = scalar_lea.sflag [#allocation3], %s371
        %s373 = sand.u32 %s63, 1
        %s374 = smul.addr %s373, 8
        %s375 = scalar_lea.vmem [#allocation2], %s374
        // Predicated region
        $region57: #{diffusion_model_forward.1} parent=55 // pred_check
          %p376 = pneg %p76
        $region58: #{diffusion_model_forward.1} parent=55 // pred_check_branch
          %378 = sbr.rel (%p376) target = $region60
        $region59: #{diffusion_model_forward.1} parent=55 // pred_region
          %380 = dma.done %s372, 128
        $region60: #{diffusion_model_forward.1} parent=55 // pred_fallthru
          _
        // Predicated region
        $region61: #{diffusion_model_forward.1} parent=55 // pred_check
          %p381 = pneg %p97
        $region62: #{diffusion_model_forward.1} parent=55 // pred_check_branch
          %383 = sbr.rel (%p381) target = $region64
        $region63: #{diffusion_model_forward.1} parent=55 // pred_region
          %385 = dma.done [#allocation6], 128
        $region64: #{diffusion_model_forward.1} parent=55 // pred_fallthru
          _
        // Predicated region
        $region65: #{diffusion_model_forward.1} parent=55 // pred_check
          %p386 = pneg %p118
        $region66: #{diffusion_model_forward.1} parent=55 // pred_check_branch
          %388 = sbr.rel (%p386) target = $region68
        $region67: #{diffusion_model_forward.1} parent=55 // pred_region
          %390 = dma.done [#allocation6], 128
        $region68: #{diffusion_model_forward.1} parent=55 // pred_fallthru
          _
        // Predicated region
        $region69: #{diffusion_model_forward.1} parent=55 // pred_check
          %p391 = pneg %p139
        $region70: #{diffusion_model_forward.1} parent=55 // pred_check_branch
          %393 = sbr.rel (%p391) target = $region72
        $region71: #{diffusion_model_forward.1} parent=55 // pred_region
          %395 = dma.done [#allocation9], 16
        $region72: #{diffusion_model_forward.1} parent=55 // pred_fallthru
          _
        // Predicated region
        $region73: #{diffusion_model_forward.1} parent=55 // pred_check
          %p396 = pneg %p181
        $region74: #{diffusion_model_forward.1} parent=55 // pred_check_branch
          %398 = sbr.rel (%p396) target = $region76
        $region75: #{diffusion_model_forward.1} parent=55 // pred_region
          %400 = dma.done [#allocation9], 16
        $region76: #{diffusion_model_forward.1} parent=55 // pred_fallthru
          _
        // Predicated region
        $region77: #{diffusion_model_forward.1} parent=55 // pred_check
          %p401 = pneg %p223
        $region78: #{diffusion_model_forward.1} parent=55 // pred_check_branch
          %403 = sbr.rel (%p401) target = $region80
        $region79: #{diffusion_model_forward.1} parent=55 // pred_region
          %405 = dma.done [#allocation12], 16
        $region80: #{diffusion_model_forward.1} parent=55 // pred_fallthru
          _
        %p406 = scmp.lt.s32.totalorder %s29, 1
        %s407 = scalar_select %p406, %s29, 1
        %s408 = smul.addr %s407, 8
        %s409 = scalar_lea.vmem %s0, %s408
        %p410 = pneg %p50
        %p411 = pneg %p47
        %s412 = sand.u32 %s63, 1
        %s413 = scalar_lea.sflag [#allocation3], %s412
        %s414 = sand.u32 %s63, 1
        %s415 = smul.addr %s414, 8
        %s416 = scalar_lea.vmem [#allocation2], %s415
        %p417 = pneg %p76
        %p418 = pneg %p73
        %p419 = pneg %p97
        %p420 = pneg %p94
        %p421 = pneg %p118
        %p422 = pneg %p115
        %p423 = pneg %p139
        %p424 = pneg %p136
        %p425 = pneg %p160
        %p426 = pneg %p157
        %p427 = pneg %p181
        %p428 = pneg %p178
        %p429 = pneg %p202
        %p430 = pneg %p199
        %p431 = pneg %p223
        %p432 = pneg %p220
        %p433 = pneg %p249
        %p434 = pneg %p246
        %s435 = sand.u32 %s236, 1
        %s436 = scalar_lea.sflag [#allocation4], %s435
        %s437 = sand.u32 %s236, 1
        %s438 = smul.addr %s437, 8
        %s439 = scalar_lea.vmem [#allocation13], %s438
        %p440 = scmp.lt.s32.totalorder %s29, 1
        %s441 = scalar_select %p440, %s29, 1
        %s442 = smul.addr %s441, 8
        %s443 = scalar_lea.vmem %s0, %s442
        %v445 = vld [vmem:[%s443] sm:$0xff]
        %v446 = vpack.c.bf16 %v445, %v445
        %v447 = vld [vmem:[%s375] sm:$0xff]
        %v448 = vpack.c.bf16 %v447, %v447
        %v449 = vld [vmem:[#allocation5] sm:$0xf]
        %v450 = vld [vmem:[#allocation5 + $0x4] sm:$0xf]
        %v451 = vld [vmem:[#allocation7] sm:$0xf]
        %v452 = vld [vmem:[#allocation7 + $0x4] sm:$0xf]
        %v455 = vunpack.c.l.b16 %v451
        %v456 = vunpack.c.l.b16 %v452
        %v457 = vpack.c.b16 %v456, %v455
        %vm459 = vcmask 130048
        %v461 = vsel %vm459, %v448, 0
        %463 = vmatpush.bf16.msra.mxu0 0
        %464 = vmatpush.bf16.msra.mxu0 0
        %465 = vmatpush.bf16.msra.mxu0 0
        %466 = vmatpush.bf16.msra.mxu0 0
        %467 = vmatpush.bf16.msra.mxu0 0
        %468 = vmatpush.bf16.msra.mxu0 0
        %469 = vmatpush.bf16.msra.mxu0 0
        %470 = vmatpush.bf16.msra.mxu0 %v457
        %471 = vmatmul.bf16.gmra.mxu0 %v461
        %v472 = vpop.f32.mrf.mxu0
        %v473 = vadd.f32 0.0, %v472
        %v474 = vpop.f32.mrf.mxu0
        %475 = vdwg.mxu0
        %v478 = vunpack.c.l.b16 %v449
        %v479 = vunpack.c.l.b16 %v450
        %v480 = vpack.c.b16 %v479, %v478
        %v483 = vsel %vm459, %v446, 0
        %485 = vmatpush.bf16.msra.mxu0 0
        %486 = vmatpush.bf16.msra.mxu0 0
        %487 = vmatpush.bf16.msra.mxu0 0
        %488 = vmatpush.bf16.msra.mxu0 0
        %489 = vmatpush.bf16.msra.mxu0 0
        %490 = vmatpush.bf16.msra.mxu0 0
        %491 = vmatpush.bf16.msra.mxu0 0
        %492 = vmatpush.bf16.msra.mxu0 %v480
        %493 = vmatmul.bf16.gmra.mxu0 %v483
        %v494 = vpop.f32.mrf.mxu0
        %v495 = vadd.f32 %v473, %v494
        %v496 = vpop.f32.mrf.mxu0
        %497 = vdwg.mxu0
        %v498 = vld [vmem:[#allocation8] sm:$0x1]
        %v500 = vperm.slane %v498, 0
        %v502 = vadd.f32 %v495, %v500
        %v503 = vmax.f32 %v502, 0.0
        %v504 = vpack.c.bf16 %v503, %v503
        %v505 = vld [vmem:[%s5] sm:$0xf]
        %v506 = vld [vmem:[%s5 + $0x4] sm:$0xf]
        %v507 = vld [vmem:[%s5 + $0x8] sm:$0xf]
        %v508 = vld [vmem:[%s5 + $0xc] sm:$0xf]
        %v509 = vld [vmem:[%s5 + $0x10] sm:$0xf]
        %v510 = vld [vmem:[%s5 + $0x14] sm:$0xf]
        %v511 = vld [vmem:[%s5 + $0x18] sm:$0xf]
        %v512 = vld [vmem:[%s5 + $0x1c] sm:$0xf]
        %v513 = vld [vmem:[%s5 + $0x20] sm:$0xf]
        %v514 = vld [vmem:[%s5 + $0x24] sm:$0xf]
        %v515 = vld [vmem:[%s5 + $0x28] sm:$0xf]
        %v516 = vld [vmem:[%s5 + $0x2c] sm:$0xf]
        %v517 = vld [vmem:[%s5 + $0x30] sm:$0xf]
        %v518 = vld [vmem:[%s5 + $0x34] sm:$0xf]
        %v519 = vld [vmem:[%s5 + $0x38] sm:$0xf]
        %v520 = vld [vmem:[%s5 + $0x3c] sm:$0xf]
        %v521 = vld [vmem:[#allocation10] sm:$0x1]
        %v523 = vperm.slane %v521, 0
        %v541 = vunpack.c.l.b16 %v505
        %v542 = vunpack.c.l.b16 %v506
        %v543 = vunpack.c.l.b16 %v507
        %v544 = vunpack.c.l.b16 %v508
        %v545 = vunpack.c.l.b16 %v509
        %v546 = vunpack.c.l.b16 %v510
        %v547 = vunpack.c.l.b16 %v511
        %v548 = vunpack.c.l.b16 %v512
        %v549 = vunpack.c.l.b16 %v513
        %v550 = vunpack.c.l.b16 %v514
        %v551 = vunpack.c.l.b16 %v515
        %v552 = vunpack.c.l.b16 %v516
        %v553 = vunpack.c.l.b16 %v517
        %v554 = vunpack.c.l.b16 %v518
        %v555 = vunpack.c.l.b16 %v519
        %v556 = vunpack.c.l.b16 %v520
        %v557 = vpack.c.b16 %v542, %v541
        %v558 = vpack.c.b16 %v544, %v543
        %v559 = vpack.c.b16 %v546, %v545
        %v560 = vpack.c.b16 %v548, %v547
        %v561 = vpack.c.b16 %v550, %v549
        %v562 = vpack.c.b16 %v552, %v551
        %v563 = vpack.c.b16 %v554, %v553
        %v564 = vpack.c.b16 %v556, %v555
        %573 = vmatpush.bf16.msra.mxu0 %v564
        %574 = vmatpush.bf16.msra.mxu0 %v563
        %575 = vmatpush.bf16.msra.mxu0 %v562
        %576 = vmatpush.bf16.msra.mxu0 %v561
        %577 = vmatpush.bf16.msra.mxu0 %v560
        %578 = vmatpush.bf16.msra.mxu0 %v559
        %579 = vmatpush.bf16.msra.mxu0 %v558
        %580 = vmatpush.bf16.msra.mxu0 %v557
        %581 = vmatmul.bf16.gmra.mxu0 %v504
        %v582 = vpop.f32.mrf.mxu0
        %v583 = vadd.f32 %v523, %v582
        %v584 = vpop.f32.mrf.mxu0
        %585 = vdwg.mxu0
        %v586 = vmax.f32 %v583, 0.0
        %v587 = vpack.c.bf16 %v586, %v586
        %v588 = vld [vmem:[%s7] sm:$0xf]
        %v589 = vld [vmem:[%s7 + $0x4] sm:$0xf]
        %v590 = vld [vmem:[%s7 + $0x8] sm:$0xf]
        %v591 = vld [vmem:[%s7 + $0xc] sm:$0xf]
        %v592 = vld [vmem:[%s7 + $0x10] sm:$0xf]
        %v593 = vld [vmem:[%s7 + $0x14] sm:$0xf]
        %v594 = vld [vmem:[%s7 + $0x18] sm:$0xf]
        %v595 = vld [vmem:[%s7 + $0x1c] sm:$0xf]
        %v596 = vld [vmem:[%s7 + $0x20] sm:$0xf]
        %v597 = vld [vmem:[%s7 + $0x24] sm:$0xf]
        %v598 = vld [vmem:[%s7 + $0x28] sm:$0xf]
        %v599 = vld [vmem:[%s7 + $0x2c] sm:$0xf]
        %v600 = vld [vmem:[%s7 + $0x30] sm:$0xf]
        %v601 = vld [vmem:[%s7 + $0x34] sm:$0xf]
        %v602 = vld [vmem:[%s7 + $0x38] sm:$0xf]
        %v603 = vld [vmem:[%s7 + $0x3c] sm:$0xf]
        %v604 = vld [vmem:[#allocation11] sm:$0x1]
        %v606 = vperm.slane %v604, 0
        %v624 = vunpack.c.l.b16 %v588
        %v625 = vunpack.c.l.b16 %v589
        %v626 = vunpack.c.l.b16 %v590
        %v627 = vunpack.c.l.b16 %v591
        %v628 = vunpack.c.l.b16 %v592
        %v629 = vunpack.c.l.b16 %v593
        %v630 = vunpack.c.l.b16 %v594
        %v631 = vunpack.c.l.b16 %v595
        %v632 = vunpack.c.l.b16 %v596
        %v633 = vunpack.c.l.b16 %v597
        %v634 = vunpack.c.l.b16 %v598
        %v635 = vunpack.c.l.b16 %v599
        %v636 = vunpack.c.l.b16 %v600
        %v637 = vunpack.c.l.b16 %v601
        %v638 = vunpack.c.l.b16 %v602
        %v639 = vunpack.c.l.b16 %v603
        %v640 = vpack.c.b16 %v625, %v624
        %v641 = vpack.c.b16 %v627, %v626
        %v642 = vpack.c.b16 %v629, %v628
        %v643 = vpack.c.b16 %v631, %v630
        %v644 = vpack.c.b16 %v633, %v632
        %v645 = vpack.c.b16 %v635, %v634
        %v646 = vpack.c.b16 %v637, %v636
        %v647 = vpack.c.b16 %v639, %v638
        %656 = vmatpush.bf16.msra.mxu0 %v647
        %657 = vmatpush.bf16.msra.mxu0 %v646
        %658 = vmatpush.bf16.msra.mxu0 %v645
        %659 = vmatpush.bf16.msra.mxu0 %v644
        %660 = vmatpush.bf16.msra.mxu0 %v643
        %661 = vmatpush.bf16.msra.mxu0 %v642
        %662 = vmatpush.bf16.msra.mxu0 %v641
        %663 = vmatpush.bf16.msra.mxu0 %v640
        %664 = vmatmul.bf16.gmra.mxu0 %v587
        %v665 = vpop.f32.mrf.mxu0
        %v666 = vadd.f32 %v606, %v665
        %v667 = vpop.f32.mrf.mxu0
        %668 = vdwg.mxu0
        %669 = vst.msk [vmem:[%s439] sm:$0xff] %vm459, %v666
        %s670 = sand.u32 %s236, 1
        %s671 = scalar_lea.sflag [#allocation4], %s670
        %s672 = sand.u32 %s236, 1
        %s673 = smul.addr %s672, 8
        %s674 = scalar_lea.vmem [#allocation13], %s673
        // Predicated region
        $region81: #{diffusion_model_forward.1} parent=55 // pred_check
          %p675 = pneg %p246
        $region82: #{diffusion_model_forward.1} parent=55 // pred_check_branch
          %677 = sbr.rel (%p675) target = $region84
        $region83: #{diffusion_model_forward.1} parent=55 // pred_region
          %679 = vsyncadd %s671, 0
          %s680 = smul.addr %s29, 8
          %s681 = scalar_lea.hbm %s9, %s680
          %s683 = sshll.u32 %s674, 4
          %s684 = int_to_ptr.vmem [resolvable:$true] %s683
          %s685 = sshll.u32 %s681, 4
          %s686 = int_to_ptr.hbm [resolvable:$true] %s685
          %688 = dma.vmem_to_hbm [thread:$0]  %s684, 128, %s686, %s671
        $region84: #{diffusion_model_forward.1} parent=55 // pred_fallthru
          _
      $region56: #{diffusion_model_forward.1} parent=5 // pred_fallthru
        _
      %p689 = scmp.le.s32.totalorder 2, %s24
      // Predicated region
      $region85: #{diffusion_model_forward.1} parent=5 // pred_check
        %p690 = pneg %p689
      $region86: #{diffusion_model_forward.1} parent=5 // pred_check_branch
        %692 = sbr.rel (%p690) target = $region88
      $region87: #{diffusion_model_forward.1} parent=5 // pred_region
        %s693 = ssub.s32 %s24, 2
        // Predicated region
        $region89: #{diffusion_model_forward.1} parent=87 // pred_check
          %p694 = pneg %p252
        $region90: #{diffusion_model_forward.1} parent=87 // pred_check_branch
          %696 = sbr.rel (%p694) target = $region92
        $region91: #{diffusion_model_forward.1} parent=87 // pred_region
          %s697 = sand.u32 %s237, 1
          %s698 = scalar_lea.sflag [#allocation4], %s697
          %s699 = sand.u32 %s237, 1
          %s700 = smul.addr %s699, 8
          %s701 = scalar_lea.vmem [#allocation13], %s700
          %703 = dma.done %s698, 128
        $region92: #{diffusion_model_forward.1} parent=87 // pred_fallthru
          _
      $region88: #{diffusion_model_forward.1} parent=5 // pred_fallthru
        _
    $region6: #{diffusion_model_forward.1} parent=1 // loop_footer
      %s28 = sadd.s32 1, %s24
    $region7: #{diffusion_model_forward.1} parent=1 // loop_footer_branch
      %23 = sbr.rel target = $region3
    $region8: #{diffusion_model_forward.1} parent=1 // loop_exit
      _
    %704 = vsyncpa [#allocation3], 1
    %s705 = scalar_lea.sflag [#allocation3], 1
    %706 = vsyncpa %s705, 1
    %707 = vsyncpa [#allocation6], 1
    %708 = vsyncpa [#allocation9], 1
    %709 = vsyncpa [#allocation12], 1
    %710 = vsyncpa [#allocation4], 1
    %s711 = scalar_lea.sflag [#allocation4], 1
    %712 = vsyncpa %s711, 1

</llo_original>
